<compile_context>
chip_gen: v6e
topology: v6e:2x2x1
jax: 0.10.0
libtpu: 0.0.40
codegen_flags: <defaults>
</compile_context>

<pallas_src>
import jax
import jax.numpy as jnp
from jax.experimental import pallas as pl
from jax.experimental.pallas import tpu as pltpu

_LANES = 128
_SUBLANES = 8


def _mish_kernel(x_ref, o_ref):
    x = x_ref[...].astype(jnp.float32)
    # Single transcendental: t = exp(-|x|)  (overflow-safe for any x).
    t = jnp.exp(-jnp.abs(x))
    t2 = t * t
    pos = x >= 0.0
    # tanh(softplus(x)) expressed in t (exact algebraic identity).
    num = jnp.where(pos, 1.0 + 2.0 * t, t * (t + 2.0))
    den = jnp.where(pos, 1.0 + 2.0 * t + 2.0 * t2, t2 + 2.0 * t + 2.0)
    y = x * (num / den)
    o_ref[...] = y.astype(o_ref.dtype)


def mish(x: jax.Array, *, tile_rows: int = 4096) -> jax.Array:
    """Elementwise Mish. Accepts any shape; returns same shape/dtype."""
    orig_shape = x.shape
    orig_dtype = x.dtype
    total = x.size

    chunk = _SUBLANES * _LANES  # 1024
    x_flat = jnp.ravel(x)
    padded = total
    if total % chunk != 0:
        # Rare path: pad up to a (8,128)-aligned slab. mish(0) == 0 and the
        # tail is sliced away below, so semantics are preserved.
        padded = ((total + chunk - 1) // chunk) * chunk
        x_flat = jnp.concatenate(
            [x_flat, jnp.zeros((padded - total,), dtype=orig_dtype)]
        )
    rows = padded // _LANES  # always a multiple of 8

    # Row tile: big (HBM-streaming), multiple of 8, capped at the array size.
    tr = max(_SUBLANES, min(tile_rows, rows))
    tr = (tr // _SUBLANES) * _SUBLANES

    grid = (pl.cdiv(rows, tr),)  # ragged last block is masked by Pallas

    x2d = x_flat.reshape(rows, _LANES)

    out2d = pl.pallas_call(
        _mish_kernel,
        out_shape=jax.ShapeDtypeStruct((rows, _LANES), orig_dtype),
        grid_spec=pltpu.PrefetchScalarGridSpec(
            num_scalar_prefetch=0,
            grid=grid,
            in_specs=[pl.BlockSpec((tr, _LANES), lambda i: (i, 0))],
            out_specs=pl.BlockSpec((tr, _LANES), lambda i: (i, 0)),
        ),
        compiler_params=pltpu.CompilerParams(
            dimension_semantics=("parallel",)
        ),
    )(x2d)

    out_flat = out2d.reshape(-1)
    if padded != total:
        out_flat = out_flat[:total]
    return out_flat.reshape(orig_shape)


def _mish_ref(x):
    xf = x.astype(jnp.float32)
    return (xf * jnp.tanh(jax.nn.softplus(xf))).astype(x.dtype)


if __name__ == "__main__":
    key = jax.random.PRNGKey(0)

    # Shape consistent with the StarGAN2 module usage (NCHW feature map).
    x = jax.random.normal(key, (2, 4, 16, 16), dtype=jnp.float32)
    y = mish(x)
    jax.block_until_ready(y)
    y_ref = _mish_ref(x)
    assert y.shape == x.shape and y.dtype == x.dtype
    assert jnp.allclose(y, y_ref, atol=1e-5, rtol=1e-5), "mismatch vs reference"

    # Validate the 1-exp rewrite at large |x| (overflow / saturation regime).
    x_big = jnp.linspace(-30.0, 30.0, 8 * 128, dtype=jnp.float32).reshape(8, 128)
    y_big = mish(x_big)
    jax.block_until_ready(y_big)
    assert jnp.allclose(y_big, _mish_ref(x_big), atol=1e-5, rtol=1e-5), (
        "mismatch vs reference at large |x|"
    )

    print("KERNEL_OK")
</pallas_src>

<mosaic_0001>
module attributes {stable_mosaic.version = 11 : i64} {
  func.func @_mish_kernel(%arg0: i32, %arg1: memref<16x128xf32, #tpu.memory_space<vmem>>, %arg2: memref<16x128xf32, #tpu.memory_space<vmem>>) attributes {dimension_semantics = [#tpu.dimension_semantics<parallel>], iteration_bounds = array<i64: 1>, scalar_prefetch = 0 : i64, scratch_operands = 0 : i64, tpu.core_type = #tpu.core_type<tc>, window_params = [{transform_indices = @transform_0, window_bounds = array<i64: 16, 128>}, {transform_indices = @transform_1, window_bounds = array<i64: 16, 128>}]} {
    %c0 = arith.constant 0 : index
    %c0_0 = arith.constant 0 : index
    %0 = vector.load %arg1[%c0, %c0_0] : memref<16x128xf32, #tpu.memory_space<vmem>>, vector<16x128xf32>
    %1 = math.absf %0 : vector<16x128xf32>
    %cst = arith.constant 0.000000e+00 : f32
    %2 = vector.broadcast %cst : f32 to vector<16x128xf32>
    %3 = arith.subf %2, %1 : vector<16x128xf32>
    %4 = math.exp %3 : vector<16x128xf32>
    %5 = arith.mulf %4, %4 : vector<16x128xf32>
    %cst_1 = arith.constant 0.000000e+00 : f32
    %6 = vector.broadcast %cst_1 : f32 to vector<16x128xf32>
    %7 = arith.cmpf oge, %0, %6 : vector<16x128xf32>
    %cst_2 = arith.constant 2.000000e+00 : f32
    %8 = vector.broadcast %cst_2 : f32 to vector<16x128xf32>
    %9 = arith.mulf %8, %4 : vector<16x128xf32>
    %cst_3 = arith.constant 1.000000e+00 : f32
    %10 = vector.broadcast %cst_3 : f32 to vector<16x128xf32>
    %11 = arith.addf %10, %9 : vector<16x128xf32>
    %cst_4 = arith.constant 2.000000e+00 : f32
    %12 = vector.broadcast %cst_4 : f32 to vector<16x128xf32>
    %13 = arith.addf %4, %12 : vector<16x128xf32>
    %14 = arith.mulf %4, %13 : vector<16x128xf32>
    %15 = arith.select %7, %11, %14 : vector<16x128xi1>, vector<16x128xf32>
    %cst_5 = arith.constant 2.000000e+00 : f32
    %16 = vector.broadcast %cst_5 : f32 to vector<16x128xf32>
    %17 = arith.mulf %16, %4 : vector<16x128xf32>
    %cst_6 = arith.constant 1.000000e+00 : f32
    %18 = vector.broadcast %cst_6 : f32 to vector<16x128xf32>
    %19 = arith.addf %18, %17 : vector<16x128xf32>
    %cst_7 = arith.constant 2.000000e+00 : f32
    %20 = vector.broadcast %cst_7 : f32 to vector<16x128xf32>
    %21 = arith.mulf %20, %5 : vector<16x128xf32>
    %22 = arith.addf %19, %21 : vector<16x128xf32>
    %cst_8 = arith.constant 2.000000e+00 : f32
    %23 = vector.broadcast %cst_8 : f32 to vector<16x128xf32>
    %24 = arith.mulf %23, %4 : vector<16x128xf32>
    %25 = arith.addf %5, %24 : vector<16x128xf32>
    %cst_9 = arith.constant 2.000000e+00 : f32
    %26 = vector.broadcast %cst_9 : f32 to vector<16x128xf32>
    %27 = arith.addf %25, %26 : vector<16x128xf32>
    %28 = arith.select %7, %22, %27 : vector<16x128xi1>, vector<16x128xf32>
    %29 = arith.divf %15, %28 : vector<16x128xf32>
    %30 = arith.mulf %0, %29 : vector<16x128xf32>
    %c0_10 = arith.constant 0 : index
    %c0_11 = arith.constant 0 : index
    %31 = vector.load %arg2[%c0_10, %c0_11] : memref<16x128xf32, #tpu.memory_space<vmem>>, vector<16x128xf32>
    tpu.vector_store %arg2[%c0_10, %c0_11], %30 {strides = array<i32>} : memref<16x128xf32, #tpu.memory_space<vmem>>, vector<16x128xf32>,
    return
  }
  func.func @transform_0(%arg0: i32) -> (i32, i32) {
    %c0_i32 = arith.constant 0 : i32
    %c0_i32_0 = arith.constant 0 : i32
    return %arg0, %c0_i32 : i32, i32
  }
  func.func @transform_1(%arg0: i32) -> (i32, i32) {
    %c0_i32 = arith.constant 0 : i32
    %c0_i32_0 = arith.constant 0 : i32
    return %arg0, %c0_i32 : i32, i32
  }
}

</mosaic_0001>

<llo_original>
// kernel: tpu_custom_call.1
$region0: #{tpu_custom_call.1}
  #allocation0 [shape = 'u32[]', space=smem, size = 0x4, offset = 0x4, fixed_abs, tag = 'smem constant byte address 0x4 - core index']
  #allocation1 [shape = 'u32[144,128]{1,0:T(1,128)}', space=vmem, size = 0x12000, scoped, tag = 'internal scratch']
  %s0 = inlined_call_operand.hbm [shape: f32[16,128], index: 0, kind: input, shape index: {}]
  %s1 = inlined_call_operand.hbm [shape: f32[16,128], index: 1, kind: output, shape index: {}]
  %s2 = sld [smem:[#allocation0]]
  $region18: #{tpu_custom_call.1} parent=0
    _
  %s4 = ssub.s32 1, %s2
  %s5 = scalar_select 0, %s4, %s2
  $region1: #{tpu_custom_call.1} parent=0
    #allocation2 [shape = 'u8[8192]{0}', space=vmem, size = 0x2000, scoped, tag = 'input window, operand 0, single buffered']
    #allocation3 [shape = 's32[1]{0}', space=sflag, size = 0x4, scoped, tag = 'scoped memory for tpu_custom_call.1']
    #allocation4 [shape = 's32[1]{0}', space=sflag, size = 0x4, scoped, tag = 'scoped memory for tpu_custom_call.1']
    #allocation5 [shape = 'u8[8192]{0}', space=vmem, size = 0x2000, scoped, tag = 'output window, operand 0, single buffered']
    %6 = vsyncpa [#allocation3], 0
    %7 = vsyncpa [#allocation4], 0
    // Predicated region
    $region2: #{tpu_custom_call.1} parent=1 // pred_check
      _
    $region3: #{tpu_custom_call.1} parent=1 // pred_check_branch
      %9 = sbr.rel (0) target = $region5
    $region4: #{tpu_custom_call.1} parent=1 // pred_region
      %s11 = ssub.s32 256, 256
      %12 = vsyncadd [#allocation3], %s11
      %s13 = sshll.u32 [#allocation2], 4
      %s14 = int_to_ptr.vmem [resolvable:$true] %s13
      %19 = dma.hbm_to_vmem [thread:$0]  %s0, 256, %s14, [#allocation3], 128, 128, 8
    $region5: #{tpu_custom_call.1} parent=1 // pred_fallthru
      _
    // Predicated region
    $region6: #{tpu_custom_call.1} parent=1 // pred_check
      _
    $region7: #{tpu_custom_call.1} parent=1 // pred_check_branch
      %21 = sbr.rel (0) target = $region9
    $region8: #{tpu_custom_call.1} parent=1 // pred_region
      %22 = dma.done [#allocation3], 256
    $region9: #{tpu_custom_call.1} parent=1 // pred_fallthru
      _
    %v23 = vld [vmem:[#allocation2] sm:$0xff]
    %v24 = vld [vmem:[#allocation2 + $0x8] sm:$0xff]
    %v25 = vand.u32 2147483647, %v23
    %v26 = vand.u32 2147483647, %v24
    %v27 = vsub.f32 0.0, %v25
    %v28 = vsub.f32 0.0, %v26
    %v29 = vmul.f32 %v27, 1.442695
    %v30 = vpow.pop %v29
    %v31 = vmul.f32 %v28, 1.442695
    %v32 = vpow.pop %v31
    %v33 = vmul.f32 %v30, %v30
    %v34 = vmul.f32 %v32, %v32
    %vm35 = vcmp.ge.f32.partialorder %v23, 0.0
    %vm36 = vcmp.ge.f32.partialorder %v24, 0.0
    %v37 = vmul.f32 %v30, 2.0
    %v38 = vmul.f32 %v32, 2.0
    %v39 = vadd.f32 %v37, 1.0
    %v40 = vadd.f32 %v38, 1.0
    %v41 = vadd.f32 %v30, 2.0
    %v42 = vadd.f32 %v32, 2.0
    %v43 = vmul.f32 %v30, %v41
    %v44 = vmul.f32 %v32, %v42
    %v45 = vsel %vm35, %v39, %v43
    %v46 = vsel %vm36, %v40, %v44
    %v47 = vmul.f32 %v33, 2.0
    %v48 = vmul.f32 %v34, 2.0
    %v49 = vadd.f32 %v39, %v47
    %v50 = vadd.f32 %v40, %v48
    %v51 = vadd.f32 %v33, %v37
    %v52 = vadd.f32 %v34, %v38
    %v53 = vadd.f32 %v51, 2.0
    %v54 = vadd.f32 %v52, 2.0
    %v55 = vsel %vm35, %v49, %v53
    %v56 = vsel %vm36, %v50, %v54
    %v57 = vrcp.pop %v55
    %v58 = vmul.f32 %v45, %v57
    %v59 = vrcp.pop %v56
    %v60 = vmul.f32 %v46, %v59
    %v61 = vmul.f32 %v23, %v58
    %v62 = vmul.f32 %v24, %v60
    %63 = vst [vmem:[#allocation5] sm:$0xff] %v61
    %64 = vst [vmem:[#allocation5 + $0x8] sm:$0xff] %v62
    // Predicated region
    $region10: #{tpu_custom_call.1} parent=1 // pred_check
      _
    $region11: #{tpu_custom_call.1} parent=1 // pred_check_branch
      %66 = sbr.rel (0) target = $region13
    $region12: #{tpu_custom_call.1} parent=1 // pred_region
      %s68 = ssub.s32 256, 256
      %69 = vsyncadd [#allocation4], %s68
      %s70 = sshll.u32 [#allocation5], 4
      %s71 = int_to_ptr.vmem [resolvable:$true] %s70
      %76 = dma.vmem_to_hbm [thread:$0]  %s71, 256, %s1, [#allocation4], 128, 128, 8
    $region13: #{tpu_custom_call.1} parent=1 // pred_fallthru
      _
    // Predicated region
    $region14: #{tpu_custom_call.1} parent=1 // pred_check
      _
    $region15: #{tpu_custom_call.1} parent=1 // pred_check_branch
      %78 = sbr.rel (0) target = $region17
    $region16: #{tpu_custom_call.1} parent=1 // pred_region
      %79 = dma.done [#allocation4], 256
    $region17: #{tpu_custom_call.1} parent=1 // pred_fallthru
      _
    %80 = vsyncpa [#allocation3], 1
    %81 = vsyncpa [#allocation4], 1

</llo_original>
